<compile_context>
chip_gen: v5e
topology: v5e:2x2
jax: 0.10.0
libtpu: 0.0.40
codegen_flags: <defaults>
</compile_context>

<pallas_src>
import jax
import jax.numpy as jnp
from jax import lax
from jax.experimental import pallas as pl
from jax.experimental.pallas import tpu as pltpu


# ---------------------------------------------------------------------------
# Kernels
# ---------------------------------------------------------------------------
def _features_kernel(x_ref, w_ref, b_ref, out_ref):
    # out = x @ W.T + b   -> (Bt, Nt); bf16 inputs, f32 accumulate.
    acc = lax.dot_general(
        x_ref[...], w_ref[...],
        dimension_numbers=(((1,), (1,)), ((), ())),
        preferred_element_type=jnp.float32,
    )
    out_ref[...] = acc + b_ref[...]


def _select_kernel(y_ref, x_ref, w_ref, b_ref, out_ref):
    # logits^T[j, i] = sum_k W[j, k] * x[i, k] + b[j]   -> (nlabels, Bt)
    logits_t = lax.dot_general(
        w_ref[...], x_ref[...],
        dimension_numbers=(((1,), (1,)), ((), ())),
        preferred_element_type=jnp.float32,
    ) + b_ref[...]                                        # (nlabels, 1) broadcast
    label_ids = lax.broadcasted_iota(jnp.int32, logits_t.shape, 0)
    mask = label_ids == y_ref[...]                        # (1, Bt) broadcast
    # One-hot masked reduce over the sublane (label) axis -> lane-dense (1, Bt).
    out_ref[...] = jnp.sum(jnp.where(mask, logits_t, 0.0), axis=0, keepdims=True)


def _max_kernel(x_ref, w_ref, b_ref, out_ref):
    logits_t = lax.dot_general(
        w_ref[...], x_ref[...],
        dimension_numbers=(((1,), (1,)), ((), ())),
        preferred_element_type=jnp.float32,
    ) + b_ref[...]
    out_ref[...] = jnp.max(logits_t, axis=0, keepdims=True)   # lane-dense (1, Bt)


# ---------------------------------------------------------------------------
# Wrapper helpers
# ---------------------------------------------------------------------------
def _round_up(x, m):
    return (x + m - 1) // m * m


def _pick_tile(dim, pref):
    """Return (tile, padded_dim). Uses one full-array block when dim <= pref."""
    if dim <= pref:
        return dim, dim
    return pref, _round_up(dim, pref)


def _vmem_limit_bytes(*tile_nbytes):
    # Double-buffered input/output tiles + headroom; floor at 16 MiB (v5e default),
    # cap at 64 MiB so the request stays safe on v7x (64 MiB physical per TC).
    need = 2 * sum(int(n) for n in tile_nbytes) + (4 << 20)
    return int(min(max(need, 16 << 20), 64 << 20))


# ---------------------------------------------------------------------------
# Public entry point
# ---------------------------------------------------------------------------
def linear_conditional_mask_logits(
    inp,
    weight,
    bias,
    y=None,
    take_best=False,
    get_features=False,
    *,
    compute_dtype=jnp.bfloat16,
    block_b=256,          # >=128, multiple of 128 -> lane-dense (1, Bt) outputs
    block_n=512,          # multiple of 256 -> MXU-aligned on v6e/v7x, 128 on v5e
):
    """Forward pass of LinearConditionalMaskLogits.

    inp:    (B, nc)
    weight: (nlabels, nc)   (PyTorch nn.Linear layout, NOT transposed)
    bias:   (nlabels,)
    y:      int array with B elements (used when not take_best/get_features).
    """
    B, nc = inp.shape
    nlabels, nc_w = weight.shape
    assert nc_w == nc, "weight must be (nlabels, nc)"

    bt, b_pad = _pick_tile(B, block_b)
    n_grid_b = b_pad // bt

    x = inp.astype(compute_dtype)
    if b_pad != B:
        x = jnp.pad(x, ((0, b_pad - B), (0, 0)))
    w = weight.astype(compute_dtype)

    itm = jnp.dtype(compute_dtype).itemsize
    flops = 2 * b_pad * nc * nlabels

    # TODO(synk): tile K (nc) with an accumulator + single bias add for very large
    # feature dims; kept whole per block here (typical discriminator-head sizes).

    if get_features:
        nt, n_pad = _pick_tile(nlabels, block_n)
        n_grid_n = n_pad // nt
        bias_row = bias.astype(jnp.float32).reshape(1, nlabels)
        w_f = w
        if n_pad != nlabels:
            w_f = jnp.pad(w_f, ((0, n_pad - nlabels), (0, 0)))
            bias_row = jnp.pad(bias_row, ((0, 0), (0, n_pad - nlabels)))

        tile_bytes = (bt * nc * itm, nt * nc * itm, nt * 4, bt * nt * 4)
        bytes_accessed = (b_pad * nc * itm + n_pad * nc * itm
                          + n_pad * 4 + b_pad * n_pad * 4)

        out = pl.pallas_call(
            _features_kernel,
            out_shape=jax.ShapeDtypeStruct((b_pad, n_pad), jnp.float32),
            grid=(n_grid_b, n_grid_n),
            in_specs=[
                pl.BlockSpec((bt, nc), lambda i, j: (i, 0)),     # x
                pl.BlockSpec((nt, nc), lambda i, j: (j, 0)),     # W  (nlabels, nc)
                pl.BlockSpec((1, nt), lambda i, j: (0, j)),      # bias row
            ],
            out_specs=pl.BlockSpec((bt, nt), lambda i, j: (i, j)),
            compiler_params=pltpu.CompilerParams(
                dimension_semantics=("parallel", "parallel"),
                vmem_limit_bytes=_vmem_limit_bytes(*tile_bytes),
            ),
            cost_estimate=pl.CostEstimate(
                flops=2 * b_pad * nc * n_pad,
                transcendentals=0,
                bytes_accessed=bytes_accessed,
            ),
        )(x, w_f, bias_row)
        return out[:B, :nlabels]

    # --- scalar-per-row paths (take_best / class-conditional select) -----------
    bias_col = bias.astype(jnp.float32).reshape(nlabels, 1)

    x_spec = pl.BlockSpec((bt, nc), lambda i: (i, 0))
    w_spec = pl.BlockSpec((nlabels, nc), lambda i: (0, 0))      # resident across grid
    b_spec = pl.BlockSpec((nlabels, 1), lambda i: (0, 0))
    out_spec = pl.BlockSpec((1, bt), lambda i: (0, i))          # lane-dense result row
    out_shape = jax.ShapeDtypeStruct((1, b_pad), jnp.float32)

    tile_bytes = (bt * nc * itm, nlabels * nc * itm,
                  nlabels * 128 * 4, bt * 4, bt * 4)
    bytes_accessed = (b_pad * nc * itm + nlabels * nc * itm
                      + nlabels * 4 + 2 * b_pad * 4)
    cparams = pltpu.CompilerParams(
        dimension_semantics=("parallel",),
        vmem_limit_bytes=_vmem_limit_bytes(*tile_bytes),
    )
    cost = pl.CostEstimate(flops=flops, transcendentals=0,
                           bytes_accessed=bytes_accessed)

    if take_best:
        out = pl.pallas_call(
            _max_kernel,
            out_shape=out_shape,
            grid=(n_grid_b,),
            in_specs=[x_spec, w_spec, b_spec],
            out_specs=out_spec,
            compiler_params=cparams,
            cost_estimate=cost,
        )(x, w, bias_col)
        return out[0, :B]

    # Default path: out[i] = logits[i, y[i]].
    assert y is not None, "y is required when take_best=False and get_features=False"
    # TODO(synk): for very large nlabels, replace the full matmul + one-hot mask with
    # a PrefetchScalarGridSpec weight-row gather (out[i] = dot(x[i], W[y[i]]) + b[y[i]]).
    y_row = y.reshape(-1).astype(jnp.int32).reshape(1, B)       # y.view(-1)
    if b_pad != B:
        y_row = jnp.pad(y_row, ((0, 0), (0, b_pad - B)))

    out = pl.pallas_call(
        _select_kernel,
        out_shape=out_shape,
        grid=(n_grid_b,),
        in_specs=[pl.BlockSpec((1, bt), lambda i: (0, i)),       # y (lane-dense)
                  x_spec, w_spec, b_spec],
        out_specs=out_spec,
        compiler_params=cparams,
        cost_estimate=cost,
    )(y_row, x, w, bias_col)
    return out[0, :B]


# ---------------------------------------------------------------------------
# Demo / self-check
# ---------------------------------------------------------------------------
if __name__ == "__main__":
    key = jax.random.PRNGKey(0)
    k_x, k_w, k_b, k_y = jax.random.split(key, 4)

    B, NC, NLABELS = 8, 32, 16

    inp = jax.random.normal(k_x, (B, NC), dtype=jnp.float32)
    weight = jax.random.uniform(
        k_w, (NLABELS, NC), dtype=jnp.float32, minval=-0.1, maxval=0.1
    )
    bias = jax.random.uniform(
        k_b, (NLABELS,), dtype=jnp.float32, minval=-0.1, maxval=0.1
    )
    y = jax.random.randint(k_y, (B, 1), 0, NLABELS)   # arbitrary shape, view(-1)'d

    # Pure-JAX reference (bf16-rounded inputs to match the bf16-MXU compute path).
    x_bf = inp.astype(jnp.bfloat16).astype(jnp.float32)
    w_bf = weight.astype(jnp.bfloat16).astype(jnp.float32)
    ref_logits = x_bf @ w_bf.T + bias
    ref_select = ref_logits[jnp.arange(B), y.reshape(-1)]
    ref_best = ref_logits.max(axis=1)

    out_feat = jax.block_until_ready(
        linear_conditional_mask_logits(inp, weight, bias, get_features=True)
    )
    out_best = jax.block_until_ready(
        linear_conditional_mask_logits(inp, weight, bias, take_best=True)
    )
    out_select = jax.block_until_ready(
        linear_conditional_mask_logits(inp, weight, bias, y=y)
    )

    assert out_feat.shape == (B, NLABELS)
    assert out_best.shape == (B,)
    assert out_select.shape == (B,)
    assert jnp.allclose(out_feat, ref_logits, atol=1e-3, rtol=1e-3)
    assert jnp.allclose(out_best, ref_best, atol=1e-3, rtol=1e-3)
    assert jnp.allclose(out_select, ref_select, atol=1e-3, rtol=1e-3)

    print("KERNEL_OK")
</pallas_src>

<mosaic_0001>
module attributes {stable_mosaic.version = 11 : i64} {
  func.func @_features_kernel(%arg0: i32, %arg1: i32, %arg2: memref<8x32xbf16, #tpu.memory_space<vmem>>, %arg3: memref<16x32xbf16, #tpu.memory_space<vmem>>, %arg4: memref<1x16xf32, #tpu.memory_space<vmem>>, %arg5: memref<8x16xf32, #tpu.memory_space<vmem>>) attributes {dimension_semantics = [#tpu.dimension_semantics<parallel>, #tpu.dimension_semantics<parallel>], iteration_bounds = array<i64: 1, 1>, scalar_prefetch = 0 : i64, scratch_operands = 0 : i64, tpu.core_type = #tpu.core_type<tc>, window_params = [{transform_indices = @transform_0, window_bounds = array<i64: 8, 32>}, {transform_indices = @transform_1, window_bounds = array<i64: 16, 32>}, {transform_indices = @transform_2, window_bounds = array<i64: 1, 16>}, {transform_indices = @transform_3, window_bounds = array<i64: 8, 16>}]} {
    %c0 = arith.constant 0 : index
    %c0_0 = arith.constant 0 : index
    %0 = vector.load %arg2[%c0, %c0_0] : memref<8x32xbf16, #tpu.memory_space<vmem>>, vector<8x32xbf16>
    %c0_1 = arith.constant 0 : index
    %c0_2 = arith.constant 0 : index
    %1 = vector.load %arg3[%c0_1, %c0_2] : memref<16x32xbf16, #tpu.memory_space<vmem>>, vector<16x32xbf16>
    %cst = arith.constant dense<0.000000e+00> : vector<8x16xf32>
    %2 = tpu.matmul %0, %1, %cst {dimension_numbers = #tpu.dot_dimension_numbers<[1], [1], [0], [0], [0, 0, 1, 0], [], []>} : vector<8x32xbf16>, vector<16x32xbf16>, vector<8x16xf32> -> vector<8x16xf32>
    %c0_3 = arith.constant 0 : index
    %c0_4 = arith.constant 0 : index
    %3 = vector.load %arg4[%c0_3, %c0_4] : memref<1x16xf32, #tpu.memory_space<vmem>>, vector<1x16xf32>
    %4 = vector.broadcast %3 : vector<1x16xf32> to vector<8x16xf32>
    %5 = arith.addf %2, %4 : vector<8x16xf32>
    %c0_5 = arith.constant 0 : index
    %c0_6 = arith.constant 0 : index
    %6 = vector.load %arg5[%c0_5, %c0_6] : memref<8x16xf32, #tpu.memory_space<vmem>>, vector<8x16xf32>
    tpu.vector_store %arg5[%c0_5, %c0_6], %5 {strides = array<i32>} : memref<8x16xf32, #tpu.memory_space<vmem>>, vector<8x16xf32>,
    return
  }
  func.func @transform_0(%arg0: i32, %arg1: i32) -> (i32, i32) {
    %c0_i32 = arith.constant 0 : i32
    %c0_i32_0 = arith.constant 0 : i32
    return %arg0, %c0_i32 : i32, i32
  }
  func.func @transform_1(%arg0: i32, %arg1: i32) -> (i32, i32) {
    %c0_i32 = arith.constant 0 : i32
    %c0_i32_0 = arith.constant 0 : i32
    return %arg1, %c0_i32 : i32, i32
  }
  func.func @transform_2(%arg0: i32, %arg1: i32) -> (i32, i32) {
    %c0_i32 = arith.constant 0 : i32
    %c0_i32_0 = arith.constant 0 : i32
    return %c0_i32, %arg1 : i32, i32
  }
  func.func @transform_3(%arg0: i32, %arg1: i32) -> (i32, i32) {
    %c0_i32 = arith.constant 0 : i32
    return %arg0, %arg1 : i32, i32
  }
}

</mosaic_0001>

<llo_original>
// kernel: tpu_custom_call.1
$region0: #{tpu_custom_call.1}
  #allocation0 [shape = 'u32[]', space=smem, size = 0x4, offset = 0x4, fixed_abs, tag = 'smem constant byte address 0x4 - core index']
  #allocation1 [shape = 'u32[72,128]{1,0:T(1,128)}', space=vmem, size = 0x9000, scoped, tag = 'internal scratch']
  %s0 = inlined_call_operand.hbm [shape: bf16[8,32], index: 0, kind: input, shape index: {}]
  %s1 = inlined_call_operand.hbm [shape: bf16[16,32], index: 1, kind: input, shape index: {}]
  %s2 = inlined_call_operand.vmem [shape: f32[1,16], index: 2, kind: input, shape index: {}]
  %s3 = inlined_call_operand.hbm [shape: f32[8,16], index: 3, kind: output, shape index: {}]
  %s4 = sld [smem:[#allocation0]]
  $region30: #{tpu_custom_call.1} parent=0
    _
  %s6 = ssub.s32 1, %s4
  %s7 = scalar_select 0, %s6, %s4
  $region1: #{tpu_custom_call.1} parent=0
    #allocation2 [shape = 'u8[2048]{0}', space=vmem, size = 0x800, scoped, tag = 'input window, operand 0, single buffered']
    #allocation3 [shape = 's32[1]{0}', space=sflag, size = 0x4, scoped, tag = 'scoped memory for tpu_custom_call.1']
    #allocation4 [shape = 's32[1]{0}', space=sflag, size = 0x4, scoped, tag = 'scoped memory for tpu_custom_call.1']
    #allocation5 [shape = 'u8[4096]{0}', space=vmem, size = 0x1000, scoped, tag = 'input window, operand 1, single buffered']
    #allocation6 [shape = 's32[1]{0}', space=sflag, size = 0x4, scoped, tag = 'scoped memory for tpu_custom_call.1']
    #allocation7 [shape = 'u8[4096]{0}', space=vmem, size = 0x1000, scoped, tag = 'output window, operand 0, single buffered']
    %8 = vsyncpa [#allocation3], 0
    %9 = vsyncpa [#allocation6], 0
    %10 = vsyncpa [#allocation4], 0
    // Predicated region
    $region2: #{tpu_custom_call.1} parent=1 // pred_check
      _
    $region3: #{tpu_custom_call.1} parent=1 // pred_check_branch
      %12 = sbr.rel (0) target = $region5
    $region4: #{tpu_custom_call.1} parent=1 // pred_region
      %14 = vsyncadd [#allocation3], 0
      %s16 = sshll.u32 %s0, 4
      %s17 = int_to_ptr.hbm [resolvable:$true] %s16
      %s18 = sshll.u32 [#allocation2], 4
      %s19 = int_to_ptr.vmem [resolvable:$true] %s18
      %21 = dma.hbm_to_vmem [thread:$0]  %s17, 64, %s19, [#allocation3]
    $region5: #{tpu_custom_call.1} parent=1 // pred_fallthru
      _
    // Predicated region
    $region6: #{tpu_custom_call.1} parent=1 // pred_check
      _
    $region7: #{tpu_custom_call.1} parent=1 // pred_check_branch
      %23 = sbr.rel (0) target = $region9
    $region8: #{tpu_custom_call.1} parent=1 // pred_region
      %25 = vsyncadd [#allocation6], 0
      %s26 = sshll.u32 %s1, 4
      %s27 = int_to_ptr.hbm [resolvable:$true] %s26
      %s28 = sshll.u32 [#allocation5], 4
      %s29 = int_to_ptr.vmem [resolvable:$true] %s28
      %34 = dma.hbm_to_vmem [thread:$0]  %s27, 128, %s29, [#allocation6], 64, 64, 4
    $region9: #{tpu_custom_call.1} parent=1 // pred_fallthru
      _
    // Predicated region
    $region10: #{tpu_custom_call.1} parent=1 // pred_check
      _
    $region11: #{tpu_custom_call.1} parent=1 // pred_check_branch
      %36 = sbr.rel (0) target = $region13
    $region12: #{tpu_custom_call.1} parent=1 // pred_region
      _
    $region13: #{tpu_custom_call.1} parent=1 // pred_fallthru
      _
    // Predicated region
    $region14: #{tpu_custom_call.1} parent=1 // pred_check
      _
    $region15: #{tpu_custom_call.1} parent=1 // pred_check_branch
      %38 = sbr.rel (0) target = $region17
    $region16: #{tpu_custom_call.1} parent=1 // pred_region
      %40 = dma.done [#allocation3], 64
    $region17: #{tpu_custom_call.1} parent=1 // pred_fallthru
      _
    // Predicated region
    $region18: #{tpu_custom_call.1} parent=1 // pred_check
      _
    $region19: #{tpu_custom_call.1} parent=1 // pred_check_branch
      %42 = sbr.rel (0) target = $region21
    $region20: #{tpu_custom_call.1} parent=1 // pred_region
      %44 = dma.done [#allocation6], 128
    $region21: #{tpu_custom_call.1} parent=1 // pred_fallthru
      _
    %v46 = vld [vmem:[#allocation2] sm:$0xf]
    %v47 = vld [vmem:[#allocation5] sm:$0xf]
    %v48 = vld [vmem:[#allocation5 + $0x4] sm:$0xf]
    %v49 = vld [vmem:[%s2] sm:$0x1]
    %v51 = vperm.slane %v49, 0
    %v55 = vunpack.c.l.b16 %v47
    %v56 = vunpack.c.l.b16 %v48
    %v57 = vpack.c.b16 %v56, %v55
    %vm58 = vcmask 261120
    %v60 = vsel %vm58, %v46, 0
    %v63 = vsel %vm58, %v57, 0
    %65 = vmatpush.bf16.xpose.msra.mxu0 0
    %66 = vmatpush.bf16.xpose.msra.mxu0 0
    %67 = vmatpush.bf16.xpose.msra.mxu0 0
    %68 = vmatpush.bf16.xpose.msra.mxu0 0
    %69 = vmatpush.bf16.xpose.msra.mxu0 0
    %70 = vmatpush.bf16.xpose.msra.mxu0 0
    %71 = vmatpush.bf16.xpose.msra.mxu0 0
    %72 = vmatpush.bf16.xpose.msra.mxu0 %v63
    %73 = vmatmul.bf16.gmra.mxu0 %v60
    %v74 = vpop.f32.mrf.mxu0
    %v75 = vadd.f32 %v51, %v74
    %v76 = vpop.f32.mrf.mxu0
    %77 = vdwg.mxu0
    %vm78 = vcmask 130048
    %79 = vst.msk [vmem:[#allocation7] sm:$0xff] %vm78, %v75
    // Predicated region
    $region22: #{tpu_custom_call.1} parent=1 // pred_check
      _
    $region23: #{tpu_custom_call.1} parent=1 // pred_check_branch
      %81 = sbr.rel (0) target = $region25
    $region24: #{tpu_custom_call.1} parent=1 // pred_region
      %83 = vsyncadd [#allocation4], 0
      %s85 = sshll.u32 [#allocation7], 4
      %s86 = int_to_ptr.vmem [resolvable:$true] %s85
      %s87 = sshll.u32 %s3, 4
      %s88 = int_to_ptr.hbm [resolvable:$true] %s87
      %90 = dma.vmem_to_hbm [thread:$0]  %s86, 128, %s88, [#allocation4]
    $region25: #{tpu_custom_call.1} parent=1 // pred_fallthru
      _
    // Predicated region
    $region26: #{tpu_custom_call.1} parent=1 // pred_check
      _
    $region27: #{tpu_custom_call.1} parent=1 // pred_check_branch
      %92 = sbr.rel (0) target = $region29
    $region28: #{tpu_custom_call.1} parent=1 // pred_region
      %94 = dma.done [#allocation4], 128
    $region29: #{tpu_custom_call.1} parent=1 // pred_fallthru
      _
    %95 = vsyncpa [#allocation3], 1
    %96 = vsyncpa [#allocation6], 1
    %97 = vsyncpa [#allocation4], 1

</llo_original>
